<compile_context>
chip_gen: v7x
topology: tpu7x:2x2x1
jax: 0.10.0
libtpu: 0.0.40
codegen_flags: <defaults>
</compile_context>

<pallas_src>
import functools

import jax
import jax.numpy as jnp
from jax.experimental import pallas as pl
from jax.experimental.pallas import tpu as pltpu

C_IN = 32                  # in_channels
NCAP = 32                  # num_types_capsules
POSE = 4
PD = NCAP * POSE * POSE    # 512 pose channels
OUT_C = PD + NCAP          # 544 = cat([pose, activation], channel dim)


def primary_caps_kernel(x_ref, w_ref, b_ref, out_ref):
    """One tm-row tile: fused 1x1-conv matmul + sigmoid on the activation lanes."""
    x = x_ref[...]                                                 # [tm, 32] bf16
    # Packed [32, 544] weight -> one MXU matmul, f32 accumulation; f32 bias add.
    acc = jnp.dot(x, w_ref[...], preferred_element_type=jnp.float32) + b_ref[...]
    # pose columns stored as-is; sigmoid only on the 32 activation columns.
    out_ref[:, :PD] = acc[:, :PD]
    out_ref[:, PD:] = jax.nn.sigmoid(acc[:, PD:])


def init_params(key):
    """Deterministic synthetic parameters with the shapes implied by __init__."""
    ks = jax.random.split(key, 4)
    # pose conv: weight [512, 32, 1, 1], bias [512]
    wp = jax.random.normal(ks[0], (PD, C_IN, 1, 1), jnp.float32) * (1.0 / C_IN) ** 0.5
    bp = jax.random.normal(ks[1], (PD,), jnp.float32) * 0.1
    # activation conv: weight [32, 32, 1, 1], bias [32]
    wa = jax.random.normal(ks[2], (NCAP, C_IN, 1, 1), jnp.float32) * (1.0 / C_IN) ** 0.5
    ba = jax.random.normal(ks[3], (NCAP,), jnp.float32) * 0.1

    # Pack both 1x1 convs: contraction dim (in-channels) first, out-channels on lanes.
    w = jnp.concatenate([wp.reshape(PD, C_IN).T, wa.reshape(NCAP, C_IN).T], axis=1)
    b = jnp.concatenate([bp, ba]).reshape(1, OUT_C)
    return w.astype(jnp.bfloat16), b.astype(jnp.float32)


def _choose_tm(m, target=1024):
    """Largest tile <= target that still leaves >= 2 tiles (v7x megacore balance).

    Rounded up to 16 rows for bf16 sublane packing.
    """
    tm = min(target, max(16, -(-m // 2)))
    return -(-tm // 16) * 16


@functools.partial(jax.jit, static_argnames=("tm",))
def primary_caps_forward(x, params, *, tm=None):
    """x: NCHW float32 [B, 32, H, W] -> NHWC [B, H, W, 544] (== out.permute(0,2,3,1))."""
    B, Cin, H, W = x.shape
    assert Cin == C_IN
    M = B * H * W
    if tm is None:
        tm = _choose_tm(M)

    # Channels-last pixel slab [M, 32] in bf16 (cast fuses into the transpose pass).
    x2 = jnp.transpose(x.astype(jnp.bfloat16), (0, 2, 3, 1)).reshape(M, C_IN)
    n_tiles = pl.cdiv(M, tm)
    Mp = n_tiles * tm
    if Mp != M:
        # Zero-padded rows are independent of real rows and are simply discarded.
        x2 = jnp.pad(x2, ((0, Mp - M), (0, 0)))

    w, b = params

    out = pl.pallas_call(
        primary_caps_kernel,
        out_shape=jax.ShapeDtypeStruct((Mp, OUT_C), jnp.float32),
        grid=(n_tiles,),
        in_specs=[
            pl.BlockSpec((tm, C_IN), lambda i: (i, 0)),      # x tile (pipelined)
            pl.BlockSpec((C_IN, OUT_C), lambda i: (0, 0)),   # packed weights (resident)
            pl.BlockSpec((1, OUT_C), lambda i: (0, 0)),      # packed bias (resident)
        ],
        # Fused, lane-dense 544-wide output: one contiguous 2176 B/row writeback DMA.
        out_specs=pl.BlockSpec((tm, OUT_C), lambda i: (i, 0)),
        compiler_params=pltpu.CompilerParams(
            dimension_semantics=("parallel",),               # rows independent -> megacore
        ),
    )(x2, w, b)

    if Mp != M:
        out = out[:M]
    # TODO(synk): output stays f32 for downstream EM routing; switch out_shape to
    # bf16 if the routing step tolerates it (halves the dominant writeback stream).
    return out.reshape(B, H, W, OUT_C)


def _reference(x, params):
    """Pure-JAX f32 reference of the PyTorch forward (for a sanity check)."""
    w, b = params
    B, Cin, H, W = x.shape
    x2 = jnp.transpose(x, (0, 2, 3, 1)).reshape(-1, Cin)
    y = x2 @ w.astype(jnp.float32) + b
    pose, act = y[:, :PD], jax.nn.sigmoid(y[:, PD:])
    return jnp.concatenate([pose, act], axis=-1).reshape(B, H, W, OUT_C)


if __name__ == "__main__":
    key = jax.random.PRNGKey(0)
    kx, kparam = jax.random.split(key)
    x = jax.random.normal(kx, (2, C_IN, 16, 16), jnp.float32)   # NCHW, 32 input channels
    params = init_params(kparam)

    out = primary_caps_forward(x, params)
    jax.block_until_ready(out)

    assert out.shape == (2, 16, 16, OUT_C), out.shape
    assert jnp.all(jnp.isfinite(out))

    ref = _reference(x, params)
    assert jnp.allclose(out, ref, atol=3e-2, rtol=3e-2), float(jnp.max(jnp.abs(out - ref)))

    print("KERNEL_OK")
</pallas_src>

<mosaic_0001>
module attributes {stable_mosaic.version = 11 : i64} {
  func.func @primary_caps_kernel(%arg0: i32, %arg1: memref<256x32xbf16, #tpu.memory_space<vmem>>, %arg2: memref<32x544xbf16, #tpu.memory_space<vmem>>, %arg3: memref<1x544xf32, #tpu.memory_space<vmem>>, %arg4: memref<256x544xf32, #tpu.memory_space<vmem>>) attributes {dimension_semantics = [#tpu.dimension_semantics<parallel>], iteration_bounds = array<i64: 2>, scalar_prefetch = 0 : i64, scratch_operands = 0 : i64, tpu.core_type = #tpu.core_type<tc>, window_params = [{transform_indices = @transform_0, window_bounds = array<i64: 256, 32>}, {pipeline_mode = #tpu.pipeline_mode<synchronous>, transform_indices = @transform_1, window_bounds = array<i64: 32, 544>}, {pipeline_mode = #tpu.pipeline_mode<synchronous>, transform_indices = @transform_2, window_bounds = array<i64: 1, 544>}, {transform_indices = @transform_3, window_bounds = array<i64: 256, 544>}]} {
    %c0 = arith.constant 0 : index
    %c0_0 = arith.constant 0 : index
    %0 = vector.load %arg1[%c0, %c0_0] : memref<256x32xbf16, #tpu.memory_space<vmem>>, vector<256x32xbf16>
    %c0_1 = arith.constant 0 : index
    %c0_2 = arith.constant 0 : index
    %1 = vector.load %arg2[%c0_1, %c0_2] : memref<32x544xbf16, #tpu.memory_space<vmem>>, vector<32x544xbf16>
    %cst = arith.constant dense<0.000000e+00> : vector<256x544xf32>
    %2 = tpu.matmul %0, %1, %cst {dimension_numbers = #tpu.dot_dimension_numbers<[1], [0], [0], [1], [0, 0, 1, 1], [], []>} : vector<256x32xbf16>, vector<32x544xbf16>, vector<256x544xf32> -> vector<256x544xf32>
    %c0_3 = arith.constant 0 : index
    %c0_4 = arith.constant 0 : index
    %3 = vector.load %arg3[%c0_3, %c0_4] : memref<1x544xf32, #tpu.memory_space<vmem>>, vector<1x544xf32>
    %4 = vector.broadcast %3 : vector<1x544xf32> to vector<256x544xf32>
    %5 = arith.addf %2, %4 : vector<256x544xf32>
    %6 = vector.extract_strided_slice %5 {offsets = [0, 0], sizes = [256, 512], strides = [1, 1]} : vector<256x544xf32> to vector<256x512xf32>
    %c0_5 = arith.constant 0 : index
    %c0_6 = arith.constant 0 : index
    %7 = vector.load %arg4[%c0_5, %c0_6] : memref<256x544xf32, #tpu.memory_space<vmem>>, vector<256x512xf32>
    tpu.vector_store %arg4[%c0_5, %c0_6], %6 {strides = array<i32>} : memref<256x544xf32, #tpu.memory_space<vmem>>, vector<256x512xf32>,
    %8 = vector.extract_strided_slice %5 {offsets = [0, 512], sizes = [256, 32], strides = [1, 1]} : vector<256x544xf32> to vector<256x32xf32>
    %9 = arith.negf %8 : vector<256x32xf32>
    %10 = math.exp %9 : vector<256x32xf32>
    %cst_7 = arith.constant 1.000000e+00 : f32
    %11 = vector.broadcast %cst_7 : f32 to vector<256x32xf32>
    %12 = arith.addf %11, %10 : vector<256x32xf32>
    %13 = arith.divf %11, %12 : vector<256x32xf32>
    %c0_8 = arith.constant 0 : index
    %c512 = arith.constant 512 : index
    %14 = vector.load %arg4[%c0_8, %c512] : memref<256x544xf32, #tpu.memory_space<vmem>>, vector<256x32xf32>
    tpu.vector_store %arg4[%c0_8, %c512], %13 {strides = array<i32>} : memref<256x544xf32, #tpu.memory_space<vmem>>, vector<256x32xf32>,
    return
  }
  func.func @transform_0(%arg0: i32) -> (i32, i32) {
    %c0_i32 = arith.constant 0 : i32
    %c0_i32_0 = arith.constant 0 : i32
    return %arg0, %c0_i32 : i32, i32
  }
  func.func @transform_1(%arg0: i32) -> (i32, i32) {
    %c0_i32 = arith.constant 0 : i32
    %c0_i32_0 = arith.constant 0 : i32
    %c0_i32_1 = arith.constant 0 : i32
    return %c0_i32, %c0_i32_0 : i32, i32
  }
  func.func @transform_2(%arg0: i32) -> (i32, i32) {
    %c0_i32 = arith.constant 0 : i32
    %c0_i32_0 = arith.constant 0 : i32
    %c0_i32_1 = arith.constant 0 : i32
    return %c0_i32, %c0_i32_0 : i32, i32
  }
  func.func @transform_3(%arg0: i32) -> (i32, i32) {
    %c0_i32 = arith.constant 0 : i32
    %c0_i32_0 = arith.constant 0 : i32
    return %arg0, %c0_i32 : i32, i32
  }
}

</mosaic_0001>

<llo_original>
// kernel: primary_caps_forward.1
$region0: #{primary_caps_forward.1}
  #allocation0 [shape = 'u32[]', space=smem, size = 0x4, offset = 0x4, fixed_abs, tag = 'smem constant byte address 0x4 - core index']
  #allocation1 [shape = 'u32[144,128]{1,0:T(1,128)}', space=vmem, size = 0x12000, scoped, tag = 'internal scratch']
  %s0 = inlined_call_operand.vmem [shape: bf16[512,32], index: 0, kind: input, shape index: {}]
  %s1 = inlined_call_operand.hbm [shape: bf16[32,544], index: 1, kind: input, shape index: {}]
  %s2 = inlined_call_operand.hbm [shape: f32[1,544], index: 2, kind: input, shape index: {}]
  %s3 = inlined_call_operand.hbm [shape: f32[512,544], index: 3, kind: output, shape index: {}]
  %s4 = sld [smem:[#allocation0]]
  $region53: #{primary_caps_forward.1} parent=0
    _
  %s6 = ssub.s32 1, %s4
  %s7 = scalar_select 0, %s6, %s4
  $region1: #{primary_caps_forward.1} parent=0
    #allocation2 [shape = 'u8[40960]{0}', space=vmem, size = 0xa000, scoped, tag = 'input window, operand 1, single buffered']
    #allocation3 [shape = 's32[2]{0}', space=sflag, size = 0x8, scoped, tag = 'scoped memory for primary_caps_forward.1']
    #allocation4 [shape = 's32[2]{0}', space=sflag, size = 0x8, scoped, tag = 'scoped memory for primary_caps_forward.1']
    #allocation5 [shape = 'u8[2560]{0}', space=vmem, size = 0xc00, scoped, tag = 'input window, operand 2, single buffered']
    #allocation6 [shape = 's32[1]{0}', space=sflag, size = 0x4, scoped, tag = 'scoped memory for primary_caps_forward.1']
    #allocation7 [shape = 'u8[1310720]{0}', space=vmem, size = 0x140000, scoped, tag = 'output window, operand 0']
    %8 = vsyncpa [#allocation3], 0
    %9 = vsyncpa [#allocation6], 0
    %10 = vsyncpa [#allocation4], 0
    %s11 = scalar_lea.sflag [#allocation4], 1
    %12 = vsyncpa %s11, 0
    loop: start=0, step=1, limit=4
    $region2: #{primary_caps_forward.1} parent=1 // loop_pre_header
      _
    $region3: #{primary_caps_forward.1} parent=1 // loop_header
      %s14 = sphi 0, %s18
      %p15 = scmp.ge.s32.totalorder %s14, 4
      %s24 = sphi 0, %s26
      %s27 = sphi 0, %s24
      %s28 = sphi 0, %s27
      %s44 = sphi 0, %s28
      %s48 = sphi 0, %s48
      %s50 = sphi 0, %s48
      %s51 = sphi 0, %s50
      %s65 = sphi 0, %s51
      %s69 = sphi 0, %s69
      %s71 = sphi 0, %s69
      %s72 = sphi 0, %s71
      %s86 = sphi 0, %s72
      %s92 = sphi 0, %s94
      %s95 = sphi 0, %s92
      %s96 = sphi 0, %s95
      %s112 = sphi 0, %s96
    $region4: #{primary_caps_forward.1} parent=1 // loop_header_branch
      %17 = sbr.rel (%p15) target = $region8
    $region5: #{primary_caps_forward.1} parent=1 // loop_body
      %s19 = ssub.s32 %s14, 1
      %s20 = ssub.s32 %s14, 2
      %s21 = sadd.s32 %s14, 1
      %s22 = ssub.s32 %s14, %s21
      %p23 = scmp.eq.s32.totalorder %s22, 0
      %s25 = sadd.s32 %s24, 1
      %s26 = scalar_select %p23, %s24, %s25
      %p29 = pneg %p23
      %p30 = scmp.eq.s32.totalorder %s14, 1
      %p31 = por %p29, %p30
      %p32 = scmp.ne.s32.totalorder %s24, %s27
      %p33 = scmp.eq.s32.totalorder %s14, 0
      %p34 = por %p32, %p33
      %p35 = scmp.ne.s32.totalorder %s24, %s27
      %p36 = scmp.eq.s32.totalorder %s19, 1
      %p37 = por %p35, %p36
      %p38 = scmp.ne.s32.totalorder %s27, %s28
      %p39 = scmp.eq.s32.totalorder %s19, 0
      %p40 = por %p38, %p39
      %p41 = scmp.ne.s32.totalorder %s27, %s28
      %p42 = scmp.eq.s32.totalorder %s20, 1
      %p43 = por %p41, %p42
      %p45 = scmp.ne.s32.totalorder %s28, %s44
      %p46 = scmp.eq.s32.totalorder %s20, 0
      %p47 = por %p45, %p46
      %s49 = sadd.s32 %s48, 1
      %p52 = scmp.eq.s32.totalorder %s14, 1
      %p53 = scmp.ne.s32.totalorder %s48, %s50
      %p54 = scmp.eq.s32.totalorder %s14, 0
      %p55 = por %p53, %p54
      %p56 = scmp.ne.s32.totalorder %s48, %s50
      %p57 = scmp.eq.s32.totalorder %s19, 1
      %p58 = por %p56, %p57
      %p59 = scmp.ne.s32.totalorder %s50, %s51
      %p60 = scmp.eq.s32.totalorder %s19, 0
      %p61 = por %p59, %p60
      %p62 = scmp.ne.s32.totalorder %s50, %s51
      %p63 = scmp.eq.s32.totalorder %s20, 1
      %p64 = por %p62, %p63
      %p66 = scmp.ne.s32.totalorder %s51, %s65
      %p67 = scmp.eq.s32.totalorder %s20, 0
      %p68 = por %p66, %p67
      %s70 = sadd.s32 %s69, 1
      %p73 = scmp.eq.s32.totalorder %s14, 1
      %p74 = scmp.ne.s32.totalorder %s69, %s71
      %p75 = scmp.eq.s32.totalorder %s14, 0
      %p76 = por %p74, %p75
      %p77 = scmp.ne.s32.totalorder %s69, %s71
      %p78 = scmp.eq.s32.totalorder %s19, 1
      %p79 = por %p77, %p78
      %p80 = scmp.ne.s32.totalorder %s71, %s72
      %p81 = scmp.eq.s32.totalorder %s19, 0
      %p82 = por %p80, %p81
      %p83 = scmp.ne.s32.totalorder %s71, %s72
      %p84 = scmp.eq.s32.totalorder %s20, 1
      %p85 = por %p83, %p84
      %p87 = scmp.ne.s32.totalorder %s72, %s86
      %p88 = scmp.eq.s32.totalorder %s20, 0
      %p89 = por %p87, %p88
      %s90 = ssub.s32 %s14, %s21
      %p91 = scmp.eq.s32.totalorder %s90, 0
      %s93 = sadd.s32 %s92, 1
      %s94 = scalar_select %p91, %s92, %s93
      %p97 = pneg %p91
      %p98 = scmp.eq.s32.totalorder %s14, 1
      %p99 = por %p97, %p98
      %p100 = scmp.ne.s32.totalorder %s92, %s95
      %p101 = scmp.eq.s32.totalorder %s14, 0
      %p102 = por %p100, %p101
      %p103 = scmp.ne.s32.totalorder %s92, %s95
      %p104 = scmp.eq.s32.totalorder %s19, 1
      %p105 = por %p103, %p104
      %p106 = scmp.ne.s32.totalorder %s95, %s96
      %p107 = scmp.eq.s32.totalorder %s19, 0
      %p108 = por %p106, %p107
      %p109 = scmp.ne.s32.totalorder %s95, %s96
      %p110 = scmp.eq.s32.totalorder %s20, 1
      %p111 = por %p109, %p110
      %p113 = scmp.ne.s32.totalorder %s96, %s112
      %p114 = scmp.eq.s32.totalorder %s20, 0
      %p115 = por %p113, %p114
      %p116 = scmp.le.s32.totalorder 1, %s14
      %p117 = scmp.lt.s32.totalorder %s14, 3
      %p118 = pnand %p116, %p117
      %p119 = pneg %p118
      // Predicated region
      $region9: #{primary_caps_forward.1} parent=5 // pred_check
        _
      $region10: #{primary_caps_forward.1} parent=5 // pred_check_branch
        %121 = sbr.rel (%p118) target = $region12
      $region11: #{primary_caps_forward.1} parent=5 // pred_region
        %s122 = ssub.s32 %s14, 1
        // Predicated region
        $region13: #{primary_caps_forward.1} parent=11 // pred_check
          %p123 = pneg %p61
        $region14: #{primary_caps_forward.1} parent=11 // pred_check_branch
          %125 = sbr.rel (%p123) target = $region16
        $region15: #{primary_caps_forward.1} parent=11 // pred_region
          %s127 = ssub.s32 1280, 1280
          %128 = vsyncadd [#allocation3], %s127
          %s129 = sshll.u32 [#allocation2], 4
          %s130 = int_to_ptr.vmem [resolvable:$true] %s129
          %135 = dma.hbm_to_vmem [thread:$0]  %s1, 1280, %s130, [#allocation3], 320, 320, 20
        $region16: #{primary_caps_forward.1} parent=11 // pred_fallthru
          _
        // Predicated region
        $region17: #{primary_caps_forward.1} parent=11 // pred_check
          %p136 = pneg %p82
        $region18: #{primary_caps_forward.1} parent=11 // pred_check_branch
          %138 = sbr.rel (%p136) target = $region20
        $region19: #{primary_caps_forward.1} parent=11 // pred_region
          %s140 = ssub.s32 80, 80
          %141 = vsyncadd [#allocation6], %s140
          %s143 = sshll.u32 [#allocation5], 4
          %s144 = int_to_ptr.vmem [resolvable:$true] %s143
          %146 = dma.hbm_to_vmem [thread:$0]  %s2, 80, %s144, [#allocation6]
        $region20: #{primary_caps_forward.1} parent=11 // pred_fallthru
          _
      $region12: #{primary_caps_forward.1} parent=5 // pred_fallthru
        _
      %p147 = scmp.lt.s32.totalorder %s14, 2
      // Predicated region
      $region21: #{primary_caps_forward.1} parent=5 // pred_check
        %p148 = pneg %p147
      $region22: #{primary_caps_forward.1} parent=5 // pred_check_branch
        %150 = sbr.rel (%p148) target = $region24
      $region23: #{primary_caps_forward.1} parent=5 // pred_region
        // Predicated region
        $region25: #{primary_caps_forward.1} parent=23 // pred_check
          %p151 = pneg %p34
        $region26: #{primary_caps_forward.1} parent=23 // pred_check_branch
          %153 = sbr.rel (%p151) target = $region28
        $region27: #{primary_caps_forward.1} parent=23 // pred_region
          %s154 = smul.u32 32, %s14
          %p155 = scmp.lt.s32.totalorder %s154, 63
          %s156 = scalar_select %p155, %s154, 63
          %s157 = smul.addr %s156, 4
          %s158 = scalar_lea.vmem %s0, %s157
          %s159 = smul.u32 32, %s14
        $region28: #{primary_caps_forward.1} parent=23 // pred_fallthru
          _
      $region24: #{primary_caps_forward.1} parent=5 // pred_fallthru
        _
      %p160 = scmp.le.s32.totalorder 1, %s14
      %p161 = scmp.lt.s32.totalorder %s14, 3
      %p162 = pnand %p160, %p161
      %p163 = pneg %p162
      // Predicated region
      $region29: #{primary_caps_forward.1} parent=5 // pred_check
        _
      $region30: #{primary_caps_forward.1} parent=5 // pred_check_branch
        %165 = sbr.rel (%p162) target = $region32
      $region31: #{primary_caps_forward.1} parent=5 // pred_region
        %s166 = ssub.s32 %s14, 1
        // Predicated region
        $region33: #{primary_caps_forward.1} parent=31 // pred_check
          %p167 = pneg %p61
        $region34: #{primary_caps_forward.1} parent=31 // pred_check_branch
          %169 = sbr.rel (%p167) target = $region36
        $region35: #{primary_caps_forward.1} parent=31 // pred_region
          %170 = dma.done [#allocation3], 1280
        $region36: #{primary_caps_forward.1} parent=31 // pred_fallthru
          _
        // Predicated region
        $region37: #{primary_caps_forward.1} parent=31 // pred_check
          %p171 = pneg %p82
        $region38: #{primary_caps_forward.1} parent=31 // pred_check_branch
          %173 = sbr.rel (%p171) target = $region40
        $region39: #{primary_caps_forward.1} parent=31 // pred_region
          %174 = dma.done [#allocation6], 80
        $region40: #{primary_caps_forward.1} parent=31 // pred_fallthru
          _
        %s175 = smul.u32 32, %s19
        %p176 = scmp.lt.s32.totalorder %s175, 63
        %s177 = scalar_select %p176, %s175, 63
        %s178 = smul.addr %s177, 4
        %s179 = scalar_lea.vmem %s0, %s178
        %p180 = pneg %p40
        %p181 = pneg %p37
        %p182 = pneg %p61
        %p183 = pneg %p58
        %p184 = pneg %p82
        %p185 = pneg %p79
        %p186 = pneg %p108
        %p187 = pneg %p105
        %s188 = sand.u32 %s95, 1
        %s189 = scalar_lea.sflag [#allocation4], %s188
        %s190 = sand.u32 %s95, 1
        %s191 = smul.addr %s190, 1280
        %s192 = scalar_lea.vmem [#allocation7], %s191
        %s193 = smul.u32 32, %s19
        %p194 = scmp.lt.s32.totalorder %s193, 63
        %s195 = scalar_select %p194, %s193, 63
        %s196 = smul.addr %s195, 4
        %s197 = scalar_lea.vmem %s0, %s196
        %s198 = smul.u32 32, %s19
        %s199 = smul.u32 32, %s19
        %v201 = vld [vmem:[%s197] sm:$0xf]
        %v202 = vld [vmem:[%s197 + $0x4] sm:$0xf]
        %v203 = vld [vmem:[%s197 + $0x8] sm:$0xf]
        %v204 = vld [vmem:[%s197 + $0xc] sm:$0xf]
        %v205 = vld [vmem:[%s197 + $0x10] sm:$0xf]
        %v206 = vld [vmem:[%s197 + $0x14] sm:$0xf]
        %v207 = vld [vmem:[%s197 + $0x18] sm:$0xf]
        %v208 = vld [vmem:[%s197 + $0x1c] sm:$0xf]
        %v209 = vld [vmem:[%s197 + $0x20] sm:$0xf]
        %v210 = vld [vmem:[%s197 + $0x24] sm:$0xf]
        %v211 = vld [vmem:[%s197 + $0x28] sm:$0xf]
        %v212 = vld [vmem:[%s197 + $0x2c] sm:$0xf]
        %v213 = vld [vmem:[%s197 + $0x30] sm:$0xf]
        %v214 = vld [vmem:[%s197 + $0x34] sm:$0xf]
        %v215 = vld [vmem:[%s197 + $0x38] sm:$0xf]
        %v216 = vld [vmem:[%s197 + $0x3c] sm:$0xf]
        %v217 = vld [vmem:[%s197 + $0x40] sm:$0xf]
        %v218 = vld [vmem:[%s197 + $0x44] sm:$0xf]
        %v219 = vld [vmem:[%s197 + $0x48] sm:$0xf]
        %v220 = vld [vmem:[%s197 + $0x4c] sm:$0xf]
        %v221 = vld [vmem:[%s197 + $0x50] sm:$0xf]
        %v222 = vld [vmem:[%s197 + $0x54] sm:$0xf]
        %v223 = vld [vmem:[%s197 + $0x58] sm:$0xf]
        %v224 = vld [vmem:[%s197 + $0x5c] sm:$0xf]
        %v225 = vld [vmem:[%s197 + $0x60] sm:$0xf]
        %v226 = vld [vmem:[%s197 + $0x64] sm:$0xf]
        %v227 = vld [vmem:[%s197 + $0x68] sm:$0xf]
        %v228 = vld [vmem:[%s197 + $0x6c] sm:$0xf]
        %v229 = vld [vmem:[%s197 + $0x70] sm:$0xf]
        %v230 = vld [vmem:[%s197 + $0x74] sm:$0xf]
        %v231 = vld [vmem:[%s197 + $0x78] sm:$0xf]
        %v232 = vld [vmem:[%s197 + $0x7c] sm:$0xf]
        %v233 = vld [vmem:[#allocation2] sm:$0xff]
        %v234 = vld [vmem:[#allocation2 + $0x8] sm:$0xff]
        %v235 = vld [vmem:[#allocation2 + $0x10] sm:$0xf]
        %v236 = vld [vmem:[#allocation2 + $0x14] sm:$0xff]
        %v237 = vld [vmem:[#allocation2 + $0x1c] sm:$0xff]
        %v238 = vld [vmem:[#allocation2 + $0x24] sm:$0xf]
        %v239 = vld [vmem:[#allocation2 + $0x28] sm:$0xff]
        %v240 = vld [vmem:[#allocation2 + $0x30] sm:$0xff]
        %v241 = vld [vmem:[#allocation2 + $0x38] sm:$0xf]
        %v242 = vld [vmem:[#allocation2 + $0x3c] sm:$0xff]
        %v243 = vld [vmem:[#allocation2 + $0x44] sm:$0xff]
        %v244 = vld [vmem:[#allocation2 + $0x4c] sm:$0xf]
        %v245 = vld [vmem:[#allocation5] sm:$0x1f]
        %v247 = vlaneseq
        %v248 = vshrl.u32 %v247, 7
        %v249 = vsub.s32 0, %v248
        %v250 = vrot.slane %v245, %v249
        %v251 = vlaneseq
        %v252 = vshrl.u32 %v251, 7
        %v253 = vsub.s32 1, %v252
        %v254 = vrot.slane %v245, %v253
        %v255 = vlaneseq
        %v256 = vshrl.u32 %v255, 7
        %v257 = vsub.s32 2, %v256
        %v258 = vrot.slane %v245, %v257
        %v259 = vlaneseq
        %v260 = vshrl.u32 %v259, 7
        %v261 = vsub.s32 3, %v260
        %v262 = vrot.slane %v245, %v261
        %v263 = vlaneseq
        %v264 = vshrl.u32 %v263, 7
        %v265 = vsub.s32 4, %v264
        %v266 = vrot.slane %v245, %v265
        %v304 = vunpack.c.l.b16 %v201
        %v305 = vunpack.c.l.b16 %v202
        %v306 = vunpack.c.l.b16 %v203
        %v307 = vunpack.c.l.b16 %v204
        %v308 = vunpack.c.l.b16 %v205
        %v309 = vunpack.c.l.b16 %v206
        %v310 = vunpack.c.l.b16 %v207
        %v311 = vunpack.c.l.b16 %v208
        %v312 = vunpack.c.l.b16 %v209
        %v313 = vunpack.c.l.b16 %v210
        %v314 = vunpack.c.l.b16 %v211
        %v315 = vunpack.c.l.b16 %v212
        %v316 = vunpack.c.l.b16 %v213
        %v317 = vunpack.c.l.b16 %v214
        %v318 = vunpack.c.l.b16 %v215
        %v319 = vunpack.c.l.b16 %v216
        %v320 = vunpack.c.l.b16 %v217
        %v321 = vunpack.c.l.b16 %v218
        %v322 = vunpack.c.l.b16 %v219
        %v323 = vunpack.c.l.b16 %v220
        %v324 = vunpack.c.l.b16 %v221
        %v325 = vunpack.c.l.b16 %v222
        %v326 = vunpack.c.l.b16 %v223
        %v327 = vunpack.c.l.b16 %v224
        %v328 = vunpack.c.l.b16 %v225
        %v329 = vunpack.c.l.b16 %v226
        %v330 = vunpack.c.l.b16 %v227
        %v331 = vunpack.c.l.b16 %v228
        %v332 = vunpack.c.l.b16 %v229
        %v333 = vunpack.c.l.b16 %v230
        %v334 = vunpack.c.l.b16 %v231
        %v335 = vunpack.c.l.b16 %v232
        %v336 = vpack.c.b16 %v305, %v304
        %v337 = vpack.c.b16 %v307, %v306
        %v338 = vpack.c.b16 %v309, %v308
        %v339 = vpack.c.b16 %v311, %v310
        %v340 = vpack.c.b16 %v313, %v312
        %v341 = vpack.c.b16 %v315, %v314
        %v342 = vpack.c.b16 %v317, %v316
        %v343 = vpack.c.b16 %v319, %v318
        %v344 = vpack.c.b16 %v321, %v320
        %v345 = vpack.c.b16 %v323, %v322
        %v346 = vpack.c.b16 %v325, %v324
        %v347 = vpack.c.b16 %v327, %v326
        %v348 = vpack.c.b16 %v329, %v328
        %v349 = vpack.c.b16 %v331, %v330
        %v350 = vpack.c.b16 %v333, %v332
        %v351 = vpack.c.b16 %v335, %v334
        %v364 = vunpack.c.l.b16 %v233
        %v365 = vunpack.c.h.b16 %v233
        %v366 = vunpack.c.l.b16 %v234
        %v367 = vunpack.c.h.b16 %v234
        %v368 = vunpack.c.l.b16 %v235
        %v369 = vunpack.c.l.b16 %v236
        %v370 = vunpack.c.h.b16 %v236
        %v371 = vunpack.c.l.b16 %v237
        %v372 = vunpack.c.h.b16 %v237
        %v373 = vunpack.c.l.b16 %v238
        %v374 = vunpack.c.l.b16 %v239
        %v375 = vunpack.c.h.b16 %v239
        %v376 = vunpack.c.l.b16 %v240
        %v377 = vunpack.c.h.b16 %v240
        %v378 = vunpack.c.l.b16 %v241
        %v379 = vunpack.c.l.b16 %v242
        %v380 = vunpack.c.h.b16 %v242
        %v381 = vunpack.c.l.b16 %v243
        %v382 = vunpack.c.h.b16 %v243
        %v383 = vunpack.c.l.b16 %v244
        %v384 = vpack.c.b16 %v369, %v364
        %v385 = vpack.c.b16 %v370, %v365
        %v386 = vpack.c.b16 %v371, %v366
        %v387 = vpack.c.b16 %v372, %v367
        %v388 = vpack.c.b16 %v373, %v368
        %v389 = vpack.c.b16 %v379, %v374
        %v390 = vpack.c.b16 %v380, %v375
        %v391 = vpack.c.b16 %v381, %v376
        %v392 = vpack.c.b16 %v382, %v377
        %v393 = vpack.c.b16 %v383, %v378
        %vm404 = vcmask 261120
        %v406 = vsel %vm404, %v336, 0
        %v409 = vsel %vm404, %v337, 0
        %v412 = vsel %vm404, %v338, 0
        %v415 = vsel %vm404, %v339, 0
        %v418 = vsel %vm404, %v340, 0
        %v421 = vsel %vm404, %v341, 0
        %v424 = vsel %vm404, %v342, 0
        %v427 = vsel %vm404, %v343, 0
        %v430 = vsel %vm404, %v344, 0
        %v433 = vsel %vm404, %v345, 0
        %v436 = vsel %vm404, %v346, 0
        %v439 = vsel %vm404, %v347, 0
        %v442 = vsel %vm404, %v348, 0
        %v445 = vsel %vm404, %v349, 0
        %v448 = vsel %vm404, %v350, 0
        %v451 = vsel %vm404, %v351, 0
        %453 = vmatprep.subr.bf16.mxu0 %v385
        %454 = vmatpush1.bf16.msra.mxu0 %v384
        %455 = vmatprep.subr.bf16.mxu0 %v390
        %456 = vmatpush1.bf16.msra.mxu0 %v389
        %457 = vmatprep.subr.bf16.mxu0 0
        %458 = vmatpush1.bf16.msra.mxu0 0
        %459 = vmatprep.subr.bf16.mxu0 0
        %460 = vmatpush1.bf16.msra.mxu0 0
        %461 = vmatprep.subr.bf16.mxu0 0
        %462 = vmatpush1.bf16.msra.mxu0 0
        %463 = vmatprep.subr.bf16.mxu0 0
        %464 = vmatpush1.bf16.msra.mxu0 0
        %465 = vmatprep.subr.bf16.mxu0 0
        %466 = vmatpush1.bf16.msra.mxu0 0
        %467 = vmatprep.subr.bf16.mxu0 0
        %468 = vmatpush1.bf16.msra.mxu0 0
        %469 = vmatprep.subr.bf16.mxu0 0
        %470 = vmatpush1.bf16.msra.mxu0 0
        %471 = vmatprep.subr.bf16.mxu0 0
        %472 = vmatpush1.bf16.msra.mxu0 0
        %473 = vmatprep.subr.bf16.mxu0 0
        %474 = vmatpush1.bf16.msra.mxu0 0
        %475 = vmatprep.subr.bf16.mxu0 0
        %476 = vmatpush1.bf16.msra.mxu0 0
        %477 = vmatprep.subr.bf16.mxu0 0
        %478 = vmatpush1.bf16.msra.mxu0 0
        %479 = vmatprep.subr.bf16.mxu0 0
        %480 = vmatpush1.bf16.msra.mxu0 0
        %481 = vmatprep.subr.bf16.mxu0 0
        %482 = vmatpush1.bf16.msra.mxu0 0
        %483 = vmatprep.subr.bf16.mxu0 0
        %484 = vmatpush1.bf16.msra.mxu0 0
        %485 = vmatprep.mubr.bf16.mxu0 0
        %486 = vmatmul.mubr.bf16.gmra.mrb[0].mxu0 %v406
        %v487 = vpop.f32.mrb[0].mxu0
        %v488 = vadd.f32 %v250, %v487
        %v489 = vpop.f32.mrb[0].mxu0
        %v490 = vadd.f32 %v254, %v489
        %v491 = vpop.f32.mrb[0].mxu0
        %v492 = vadd.f32 %v250, %v491
        %v493 = vpop.f32.mrb[0].mxu0
        %v494 = vadd.f32 %v254, %v493
        %495 = vmatprep.mubr.bf16.mxu0 0
        %496 = vmatmul.mubr.bf16.gmra.mrb[0].mxu0 %v409
        %v497 = vpop.f32.mrb[0].mxu0
        %v498 = vadd.f32 %v250, %v497
        %v499 = vpop.f32.mrb[0].mxu0
        %v500 = vadd.f32 %v254, %v499
        %v501 = vpop.f32.mrb[0].mxu0
        %v502 = vadd.f32 %v250, %v501
        %v503 = vpop.f32.mrb[0].mxu0
        %v504 = vadd.f32 %v254, %v503
        %505 = vmatprep.mubr.bf16.mxu0 0
        %506 = vmatmul.mubr.bf16.gmra.mrb[0].mxu0 %v412
        %v507 = vpop.f32.mrb[0].mxu0
        %v508 = vadd.f32 %v250, %v507
        %v509 = vpop.f32.mrb[0].mxu0
        %v510 = vadd.f32 %v254, %v509
        %v511 = vpop.f32.mrb[0].mxu0
        %v512 = vadd.f32 %v250, %v511
        %v513 = vpop.f32.mrb[0].mxu0
        %v514 = vadd.f32 %v254, %v513
        %515 = vmatprep.mubr.bf16.mxu0 0
        %516 = vmatmul.mubr.bf16.gmra.mrb[0].mxu0 %v415
        %v517 = vpop.f32.mrb[0].mxu0
        %v518 = vadd.f32 %v250, %v517
        %v519 = vpop.f32.mrb[0].mxu0
        %v520 = vadd.f32 %v254, %v519
        %v521 = vpop.f32.mrb[0].mxu0
        %v522 = vadd.f32 %v250, %v521
        %v523 = vpop.f32.mrb[0].mxu0
        %v524 = vadd.f32 %v254, %v523
        %525 = vmatprep.mubr.bf16.mxu0 0
        %526 = vmatmul.mubr.bf16.gmra.mrb[0].mxu0 %v418
        %v527 = vpop.f32.mrb[0].mxu0
        %v528 = vadd.f32 %v250, %v527
        %v529 = vpop.f32.mrb[0].mxu0
        %v530 = vadd.f32 %v254, %v529
        %v531 = vpop.f32.mrb[0].mxu0
        %v532 = vadd.f32 %v250, %v531
        %v533 = vpop.f32.mrb[0].mxu0
        %v534 = vadd.f32 %v254, %v533
        %535 = vmatprep.mubr.bf16.mxu0 0
        %536 = vmatmul.mubr.bf16.gmra.mrb[0].mxu0 %v421
        %v537 = vpop.f32.mrb[0].mxu0
        %v538 = vadd.f32 %v250, %v537
        %v539 = vpop.f32.mrb[0].mxu0
        %v540 = vadd.f32 %v254, %v539
        %v541 = vpop.f32.mrb[0].mxu0
        %v542 = vadd.f32 %v250, %v541
        %v543 = vpop.f32.mrb[0].mxu0
        %v544 = vadd.f32 %v254, %v543
        %545 = vmatprep.mubr.bf16.mxu0 0
        %546 = vmatmul.mubr.bf16.gmra.mrb[0].mxu0 %v424
        %v547 = vpop.f32.mrb[0].mxu0
        %v548 = vadd.f32 %v250, %v547
        %v549 = vpop.f32.mrb[0].mxu0
        %v550 = vadd.f32 %v254, %v549
        %v551 = vpop.f32.mrb[0].mxu0
        %v552 = vadd.f32 %v250, %v551
        %v553 = vpop.f32.mrb[0].mxu0
        %v554 = vadd.f32 %v254, %v553
        %555 = vmatprep.mubr.bf16.mxu0 0
        %556 = vmatmul.mubr.bf16.gmra.mrb[0].mxu0 %v427
        %v557 = vpop.f32.mrb[0].mxu0
        %v558 = vadd.f32 %v250, %v557
        %v559 = vpop.f32.mrb[0].mxu0
        %v560 = vadd.f32 %v254, %v559
        %v561 = vpop.f32.mrb[0].mxu0
        %v562 = vadd.f32 %v250, %v561
        %v563 = vpop.f32.mrb[0].mxu0
        %v564 = vadd.f32 %v254, %v563
        %565 = vmatprep.mubr.bf16.mxu0 0
        %566 = vmatmul.mubr.bf16.gmra.mrb[0].mxu0 %v430
        %v567 = vpop.f32.mrb[0].mxu0
        %v568 = vadd.f32 %v250, %v567
        %v569 = vpop.f32.mrb[0].mxu0
        %v570 = vadd.f32 %v254, %v569
        %v571 = vpop.f32.mrb[0].mxu0
        %v572 = vadd.f32 %v250, %v571
        %v573 = vpop.f32.mrb[0].mxu0
        %v574 = vadd.f32 %v254, %v573
        %575 = vmatprep.mubr.bf16.mxu0 0
        %576 = vmatmul.mubr.bf16.gmra.mrb[0].mxu0 %v433
        %v577 = vpop.f32.mrb[0].mxu0
        %v578 = vadd.f32 %v250, %v577
        %v579 = vpop.f32.mrb[0].mxu0
        %v580 = vadd.f32 %v254, %v579
        %v581 = vpop.f32.mrb[0].mxu0
        %v582 = vadd.f32 %v250, %v581
        %v583 = vpop.f32.mrb[0].mxu0
        %v584 = vadd.f32 %v254, %v583
        %585 = vmatprep.mubr.bf16.mxu0 0
        %586 = vmatmul.mubr.bf16.gmra.mrb[0].mxu0 %v436
        %v587 = vpop.f32.mrb[0].mxu0
        %v588 = vadd.f32 %v250, %v587
        %v589 = vpop.f32.mrb[0].mxu0
        %v590 = vadd.f32 %v254, %v589
        %v591 = vpop.f32.mrb[0].mxu0
        %v592 = vadd.f32 %v250, %v591
        %v593 = vpop.f32.mrb[0].mxu0
        %v594 = vadd.f32 %v254, %v593
        %595 = vmatprep.mubr.bf16.mxu0 0
        %596 = vmatmul.mubr.bf16.gmra.mrb[0].mxu0 %v439
        %v597 = vpop.f32.mrb[0].mxu0
        %v598 = vadd.f32 %v250, %v597
        %v599 = vpop.f32.mrb[0].mxu0
        %v600 = vadd.f32 %v254, %v599
        %v601 = vpop.f32.mrb[0].mxu0
        %v602 = vadd.f32 %v250, %v601
        %v603 = vpop.f32.mrb[0].mxu0
        %v604 = vadd.f32 %v254, %v603
        %605 = vmatprep.mubr.bf16.mxu0 0
        %606 = vmatmul.mubr.bf16.gmra.mrb[0].mxu0 %v442
        %v607 = vpop.f32.mrb[0].mxu0
        %v608 = vadd.f32 %v250, %v607
        %v609 = vpop.f32.mrb[0].mxu0
        %v610 = vadd.f32 %v254, %v609
        %v611 = vpop.f32.mrb[0].mxu0
        %v612 = vadd.f32 %v250, %v611
        %v613 = vpop.f32.mrb[0].mxu0
        %v614 = vadd.f32 %v254, %v613
        %615 = vmatprep.mubr.bf16.mxu0 0
        %616 = vmatmul.mubr.bf16.gmra.mrb[0].mxu0 %v445
        %v617 = vpop.f32.mrb[0].mxu0
        %v618 = vadd.f32 %v250, %v617
        %v619 = vpop.f32.mrb[0].mxu0
        %v620 = vadd.f32 %v254, %v619
        %v621 = vpop.f32.mrb[0].mxu0
        %v622 = vadd.f32 %v250, %v621
        %v623 = vpop.f32.mrb[0].mxu0
        %v624 = vadd.f32 %v254, %v623
        %625 = vmatprep.mubr.bf16.mxu0 0
        %626 = vmatmul.mubr.bf16.gmra.mrb[0].mxu0 %v448
        %v627 = vpop.f32.mrb[0].mxu0
        %v628 = vadd.f32 %v250, %v627
        %v629 = vpop.f32.mrb[0].mxu0
        %v630 = vadd.f32 %v254, %v629
        %v631 = vpop.f32.mrb[0].mxu0
        %v632 = vadd.f32 %v250, %v631
        %v633 = vpop.f32.mrb[0].mxu0
        %v634 = vadd.f32 %v254, %v633
        %635 = vmatprep.mubr.bf16.mxu0 0
        %636 = vmatmul.mubr.bf16.gmra.mrb[0].mxu0 %v451
        %v637 = vpop.f32.mrb[0].mxu0
        %v638 = vadd.f32 %v250, %v637
        %v639 = vpop.f32.mrb[0].mxu0
        %v640 = vadd.f32 %v254, %v639
        %v641 = vpop.f32.mrb[0].mxu0
        %v642 = vadd.f32 %v250, %v641
        %v643 = vpop.f32.mrb[0].mxu0
        %v644 = vadd.f32 %v254, %v643
        %645 = vdwg.mxu0
        %646 = vmatprep.subr.bf16.mxu0 %v387
        %647 = vmatpush1.bf16.msra.mxu0 %v386
        %648 = vmatprep.subr.bf16.mxu0 %v392
        %649 = vmatpush1.bf16.msra.mxu0 %v391
        %650 = vmatprep.subr.bf16.mxu0 0
        %651 = vmatpush1.bf16.msra.mxu0 0
        %652 = vmatprep.subr.bf16.mxu0 0
        %653 = vmatpush1.bf16.msra.mxu0 0
        %654 = vmatprep.subr.bf16.mxu0 0
        %655 = vmatpush1.bf16.msra.mxu0 0
        %656 = vmatprep.subr.bf16.mxu0 0
        %657 = vmatpush1.bf16.msra.mxu0 0
        %658 = vmatprep.subr.bf16.mxu0 0
        %659 = vmatpush1.bf16.msra.mxu0 0
        %660 = vmatprep.subr.bf16.mxu0 0
        %661 = vmatpush1.bf16.msra.mxu0 0
        %662 = vmatprep.subr.bf16.mxu0 0
        %663 = vmatpush1.bf16.msra.mxu0 0
        %664 = vmatprep.subr.bf16.mxu0 0
        %665 = vmatpush1.bf16.msra.mxu0 0
        %666 = vmatprep.subr.bf16.mxu0 0
        %667 = vmatpush1.bf16.msra.mxu0 0
        %668 = vmatprep.subr.bf16.mxu0 0
        %669 = vmatpush1.bf16.msra.mxu0 0
        %670 = vmatprep.subr.bf16.mxu0 0
        %671 = vmatpush1.bf16.msra.mxu0 0
        %672 = vmatprep.subr.bf16.mxu0 0
        %673 = vmatpush1.bf16.msra.mxu0 0
        %674 = vmatprep.subr.bf16.mxu0 0
        %675 = vmatpush1.bf16.msra.mxu0 0
        %676 = vmatprep.subr.bf16.mxu0 0
        %677 = vmatpush1.bf16.msra.mxu0 0
        %678 = vmatprep.mubr.bf16.mxu0 0
        %679 = vmatmul.mubr.bf16.gmra.mrb[0].mxu0 %v406
        %v680 = vpop.f32.mrb[0].mxu0
        %v681 = vadd.f32 %v258, %v680
        %v682 = vpop.f32.mrb[0].mxu0
        %v683 = vadd.f32 %v262, %v682
        %v684 = vpop.f32.mrb[0].mxu0
        %v685 = vadd.f32 %v258, %v684
        %v686 = vpop.f32.mrb[0].mxu0
        %v687 = vadd.f32 %v262, %v686
        %688 = vmatprep.mubr.bf16.mxu0 0
        %689 = vmatmul.mubr.bf16.gmra.mrb[0].mxu0 %v409
        %v690 = vpop.f32.mrb[0].mxu0
        %v691 = vadd.f32 %v258, %v690
        %v692 = vpop.f32.mrb[0].mxu0
        %v693 = vadd.f32 %v262, %v692
        %v694 = vpop.f32.mrb[0].mxu0
        %v695 = vadd.f32 %v258, %v694
        %v696 = vpop.f32.mrb[0].mxu0
        %v697 = vadd.f32 %v262, %v696
        %698 = vmatprep.mubr.bf16.mxu0 0
        %699 = vmatmul.mubr.bf16.gmra.mrb[0].mxu0 %v412
        %v700 = vpop.f32.mrb[0].mxu0
        %v701 = vadd.f32 %v258, %v700
        %v702 = vpop.f32.mrb[0].mxu0
        %v703 = vadd.f32 %v262, %v702
        %v704 = vpop.f32.mrb[0].mxu0
        %v705 = vadd.f32 %v258, %v704
        %v706 = vpop.f32.mrb[0].mxu0
        %v707 = vadd.f32 %v262, %v706
        %708 = vmatprep.mubr.bf16.mxu0 0
        %709 = vmatmul.mubr.bf16.gmra.mrb[0].mxu0 %v415
        %v710 = vpop.f32.mrb[0].mxu0
        %v711 = vadd.f32 %v258, %v710
        %v712 = vpop.f32.mrb[0].mxu0
        %v713 = vadd.f32 %v262, %v712
        %v714 = vpop.f32.mrb[0].mxu0
        %v715 = vadd.f32 %v258, %v714
        %v716 = vpop.f32.mrb[0].mxu0
        %v717 = vadd.f32 %v262, %v716
        %718 = vmatprep.mubr.bf16.mxu0 0
        %719 = vmatmul.mubr.bf16.gmra.mrb[0].mxu0 %v418
        %v720 = vpop.f32.mrb[0].mxu0
        %v721 = vadd.f32 %v258, %v720
        %v722 = vpop.f32.mrb[0].mxu0
        %v723 = vadd.f32 %v262, %v722
        %v724 = vpop.f32.mrb[0].mxu0
        %v725 = vadd.f32 %v258, %v724
        %v726 = vpop.f32.mrb[0].mxu0
        %v727 = vadd.f32 %v262, %v726
        %728 = vmatprep.mubr.bf16.mxu0 0
        %729 = vmatmul.mubr.bf16.gmra.mrb[0].mxu0 %v421
        %v730 = vpop.f32.mrb[0].mxu0
        %v731 = vadd.f32 %v258, %v730
        %v732 = vpop.f32.mrb[0].mxu0
        %v733 = vadd.f32 %v262, %v732
        %v734 = vpop.f32.mrb[0].mxu0
        %v735 = vadd.f32 %v258, %v734
        %v736 = vpop.f32.mrb[0].mxu0
        %v737 = vadd.f32 %v262, %v736
        %738 = vmatprep.mubr.bf16.mxu0 0
        %739 = vmatmul.mubr.bf16.gmra.mrb[0].mxu0 %v424
        %v740 = vpop.f32.mrb[0].mxu0
        %v741 = vadd.f32 %v258, %v740
        %v742 = vpop.f32.mrb[0].mxu0
        %v743 = vadd.f32 %v262, %v742
        %v744 = vpop.f32.mrb[0].mxu0
        %v745 = vadd.f32 %v258, %v744
        %v746 = vpop.f32.mrb[0].mxu0
        %v747 = vadd.f32 %v262, %v746
        %748 = vmatprep.mubr.bf16.mxu0 0
        %749 = vmatmul.mubr.bf16.gmra.mrb[0].mxu0 %v427
        %v750 = vpop.f32.mrb[0].mxu0
        %v751 = vadd.f32 %v258, %v750
        %v752 = vpop.f32.mrb[0].mxu0
        %v753 = vadd.f32 %v262, %v752
        %v754 = vpop.f32.mrb[0].mxu0
        %v755 = vadd.f32 %v258, %v754
        %v756 = vpop.f32.mrb[0].mxu0
        %v757 = vadd.f32 %v262, %v756
        %758 = vmatprep.mubr.bf16.mxu0 0
        %759 = vmatmul.mubr.bf16.gmra.mrb[0].mxu0 %v430
        %v760 = vpop.f32.mrb[0].mxu0
        %v761 = vadd.f32 %v258, %v760
        %v762 = vpop.f32.mrb[0].mxu0
        %v763 = vadd.f32 %v262, %v762
        %v764 = vpop.f32.mrb[0].mxu0
        %v765 = vadd.f32 %v258, %v764
        %v766 = vpop.f32.mrb[0].mxu0
        %v767 = vadd.f32 %v262, %v766
        %768 = vmatprep.mubr.bf16.mxu0 0
        %769 = vmatmul.mubr.bf16.gmra.mrb[0].mxu0 %v433
        %v770 = vpop.f32.mrb[0].mxu0
        %v771 = vadd.f32 %v258, %v770
        %v772 = vpop.f32.mrb[0].mxu0
        %v773 = vadd.f32 %v262, %v772
        %v774 = vpop.f32.mrb[0].mxu0
        %v775 = vadd.f32 %v258, %v774
        %v776 = vpop.f32.mrb[0].mxu0
        %v777 = vadd.f32 %v262, %v776
        %778 = vmatprep.mubr.bf16.mxu0 0
        %779 = vmatmul.mubr.bf16.gmra.mrb[0].mxu0 %v436
        %v780 = vpop.f32.mrb[0].mxu0
        %v781 = vadd.f32 %v258, %v780
        %v782 = vpop.f32.mrb[0].mxu0
        %v783 = vadd.f32 %v262, %v782
        %v784 = vpop.f32.mrb[0].mxu0
        %v785 = vadd.f32 %v258, %v784
        %v786 = vpop.f32.mrb[0].mxu0
        %v787 = vadd.f32 %v262, %v786
        %788 = vmatprep.mubr.bf16.mxu0 0
        %789 = vmatmul.mubr.bf16.gmra.mrb[0].mxu0 %v439
        %v790 = vpop.f32.mrb[0].mxu0
        %v791 = vadd.f32 %v258, %v790
        %v792 = vpop.f32.mrb[0].mxu0
        %v793 = vadd.f32 %v262, %v792
        %v794 = vpop.f32.mrb[0].mxu0
        %v795 = vadd.f32 %v258, %v794
        %v796 = vpop.f32.mrb[0].mxu0
        %v797 = vadd.f32 %v262, %v796
        %798 = vmatprep.mubr.bf16.mxu0 0
        %799 = vmatmul.mubr.bf16.gmra.mrb[0].mxu0 %v442
        %v800 = vpop.f32.mrb[0].mxu0
        %v801 = vadd.f32 %v258, %v800
        %v802 = vpop.f32.mrb[0].mxu0
        %v803 = vadd.f32 %v262, %v802
        %v804 = vpop.f32.mrb[0].mxu0
        %v805 = vadd.f32 %v258, %v804
        %v806 = vpop.f32.mrb[0].mxu0
        %v807 = vadd.f32 %v262, %v806
        %808 = vmatprep.mubr.bf16.mxu0 0
        %809 = vmatmul.mubr.bf16.gmra.mrb[0].mxu0 %v445
        %v810 = vpop.f32.mrb[0].mxu0
        %v811 = vadd.f32 %v258, %v810
        %v812 = vpop.f32.mrb[0].mxu0
        %v813 = vadd.f32 %v262, %v812
        %v814 = vpop.f32.mrb[0].mxu0
        %v815 = vadd.f32 %v258, %v814
        %v816 = vpop.f32.mrb[0].mxu0
        %v817 = vadd.f32 %v262, %v816
        %818 = vmatprep.mubr.bf16.mxu0 0
        %819 = vmatmul.mubr.bf16.gmra.mrb[0].mxu0 %v448
        %v820 = vpop.f32.mrb[0].mxu0
        %v821 = vadd.f32 %v258, %v820
        %v822 = vpop.f32.mrb[0].mxu0
        %v823 = vadd.f32 %v262, %v822
        %v824 = vpop.f32.mrb[0].mxu0
        %v825 = vadd.f32 %v258, %v824
        %v826 = vpop.f32.mrb[0].mxu0
        %v827 = vadd.f32 %v262, %v826
        %828 = vmatprep.mubr.bf16.mxu0 0
        %829 = vmatmul.mubr.bf16.gmra.mrb[0].mxu0 %v451
        %v830 = vpop.f32.mrb[0].mxu0
        %v831 = vadd.f32 %v258, %v830
        %v832 = vpop.f32.mrb[0].mxu0
        %v833 = vadd.f32 %v262, %v832
        %v834 = vpop.f32.mrb[0].mxu0
        %v835 = vadd.f32 %v258, %v834
        %v836 = vpop.f32.mrb[0].mxu0
        %v837 = vadd.f32 %v262, %v836
        %838 = vdwg.mxu0
        %839 = vmatprep.subr.bf16.mxu0 0
        %840 = vmatpush1.bf16.msra.mxu0 %v388
        %841 = vmatprep.subr.bf16.mxu0 0
        %842 = vmatpush1.bf16.msra.mxu0 %v393
        %843 = vmatprep.subr.bf16.mxu0 0
        %844 = vmatpush1.bf16.msra.mxu0 0
        %845 = vmatprep.subr.bf16.mxu0 0
        %846 = vmatpush1.bf16.msra.mxu0 0
        %847 = vmatprep.subr.bf16.mxu0 0
        %848 = vmatpush1.bf16.msra.mxu0 0
        %849 = vmatprep.subr.bf16.mxu0 0
        %850 = vmatpush1.bf16.msra.mxu0 0
        %851 = vmatprep.subr.bf16.mxu0 0
        %852 = vmatpush1.bf16.msra.mxu0 0
        %853 = vmatprep.subr.bf16.mxu0 0
        %854 = vmatpush1.bf16.msra.mxu0 0
        %855 = vmatprep.subr.bf16.mxu0 0
        %856 = vmatpush1.bf16.msra.mxu0 0
        %857 = vmatprep.subr.bf16.mxu0 0
        %858 = vmatpush1.bf16.msra.mxu0 0
        %859 = vmatprep.subr.bf16.mxu0 0
        %860 = vmatpush1.bf16.msra.mxu0 0
        %861 = vmatprep.subr.bf16.mxu0 0
        %862 = vmatpush1.bf16.msra.mxu0 0
        %863 = vmatprep.subr.bf16.mxu0 0
        %864 = vmatpush1.bf16.msra.mxu0 0
        %865 = vmatprep.subr.bf16.mxu0 0
        %866 = vmatpush1.bf16.msra.mxu0 0
        %867 = vmatprep.subr.bf16.mxu0 0
        %868 = vmatpush1.bf16.msra.mxu0 0
        %869 = vmatprep.subr.bf16.mxu0 0
        %870 = vmatpush1.bf16.msra.mxu0 0
        %871 = vmatprep.mubr.bf16.mxu0 0
        %872 = vmatmul.mubr.bf16.gmra.mrb[0].mxu0 %v406
        %v873 = vpop.f32.mrb[0].mxu0
        %v874 = vadd.f32 %v266, %v873
        %v875 = vpop.f32.mrb[0].mxu0
        %v876 = vpop.f32.mrb[0].mxu0
        %v877 = vadd.f32 %v266, %v876
        %v878 = vpop.f32.mrb[0].mxu0
        %879 = vmatprep.mubr.bf16.mxu0 0
        %880 = vmatmul.mubr.bf16.gmra.mrb[0].mxu0 %v409
        %v881 = vpop.f32.mrb[0].mxu0
        %v882 = vadd.f32 %v266, %v881
        %v883 = vpop.f32.mrb[0].mxu0
        %v884 = vpop.f32.mrb[0].mxu0
        %v885 = vadd.f32 %v266, %v884
        %v886 = vpop.f32.mrb[0].mxu0
        %887 = vmatprep.mubr.bf16.mxu0 0
        %888 = vmatmul.mubr.bf16.gmra.mrb[0].mxu0 %v412
        %v889 = vpop.f32.mrb[0].mxu0
        %v890 = vadd.f32 %v266, %v889
        %v891 = vpop.f32.mrb[0].mxu0
        %v892 = vpop.f32.mrb[0].mxu0
        %v893 = vadd.f32 %v266, %v892
        %v894 = vpop.f32.mrb[0].mxu0
        %895 = vmatprep.mubr.bf16.mxu0 0
        %896 = vmatmul.mubr.bf16.gmra.mrb[0].mxu0 %v415
        %v897 = vpop.f32.mrb[0].mxu0
        %v898 = vadd.f32 %v266, %v897
        %v899 = vpop.f32.mrb[0].mxu0
        %v900 = vpop.f32.mrb[0].mxu0
        %v901 = vadd.f32 %v266, %v900
        %v902 = vpop.f32.mrb[0].mxu0
        %903 = vmatprep.mubr.bf16.mxu0 0
        %904 = vmatmul.mubr.bf16.gmra.mrb[0].mxu0 %v418
        %v905 = vpop.f32.mrb[0].mxu0
        %v906 = vadd.f32 %v266, %v905
        %v907 = vpop.f32.mrb[0].mxu0
        %v908 = vpop.f32.mrb[0].mxu0
        %v909 = vadd.f32 %v266, %v908
        %v910 = vpop.f32.mrb[0].mxu0
        %911 = vmatprep.mubr.bf16.mxu0 0
        %912 = vmatmul.mubr.bf16.gmra.mrb[0].mxu0 %v421
        %v913 = vpop.f32.mrb[0].mxu0
        %v914 = vadd.f32 %v266, %v913
        %v915 = vpop.f32.mrb[0].mxu0
        %v916 = vpop.f32.mrb[0].mxu0
        %v917 = vadd.f32 %v266, %v916
        %v918 = vpop.f32.mrb[0].mxu0
        %919 = vmatprep.mubr.bf16.mxu0 0
        %920 = vmatmul.mubr.bf16.gmra.mrb[0].mxu0 %v424
        %v921 = vpop.f32.mrb[0].mxu0
        %v922 = vadd.f32 %v266, %v921
        %v923 = vpop.f32.mrb[0].mxu0
        %v924 = vpop.f32.mrb[0].mxu0
        %v925 = vadd.f32 %v266, %v924
        %v926 = vpop.f32.mrb[0].mxu0
        %927 = vmatprep.mubr.bf16.mxu0 0
        %928 = vmatmul.mubr.bf16.gmra.mrb[0].mxu0 %v427
        %v929 = vpop.f32.mrb[0].mxu0
        %v930 = vadd.f32 %v266, %v929
        %v931 = vpop.f32.mrb[0].mxu0
        %v932 = vpop.f32.mrb[0].mxu0
        %v933 = vadd.f32 %v266, %v932
        %v934 = vpop.f32.mrb[0].mxu0
        %935 = vmatprep.mubr.bf16.mxu0 0
        %936 = vmatmul.mubr.bf16.gmra.mrb[0].mxu0 %v430
        %v937 = vpop.f32.mrb[0].mxu0
        %v938 = vadd.f32 %v266, %v937
        %v939 = vpop.f32.mrb[0].mxu0
        %v940 = vpop.f32.mrb[0].mxu0
        %v941 = vadd.f32 %v266, %v940
        %v942 = vpop.f32.mrb[0].mxu0
        %943 = vmatprep.mubr.bf16.mxu0 0
        %944 = vmatmul.mubr.bf16.gmra.mrb[0].mxu0 %v433
        %v945 = vpop.f32.mrb[0].mxu0
        %v946 = vadd.f32 %v266, %v945
        %v947 = vpop.f32.mrb[0].mxu0
        %v948 = vpop.f32.mrb[0].mxu0
        %v949 = vadd.f32 %v266, %v948
        %v950 = vpop.f32.mrb[0].mxu0
        %951 = vmatprep.mubr.bf16.mxu0 0
        %952 = vmatmul.mubr.bf16.gmra.mrb[0].mxu0 %v436
        %v953 = vpop.f32.mrb[0].mxu0
        %v954 = vadd.f32 %v266, %v953
        %v955 = vpop.f32.mrb[0].mxu0
        %v956 = vpop.f32.mrb[0].mxu0
        %v957 = vadd.f32 %v266, %v956
        %v958 = vpop.f32.mrb[0].mxu0
        %959 = vmatprep.mubr.bf16.mxu0 0
        %960 = vmatmul.mubr.bf16.gmra.mrb[0].mxu0 %v439
        %v961 = vpop.f32.mrb[0].mxu0
        %v962 = vadd.f32 %v266, %v961
        %v963 = vpop.f32.mrb[0].mxu0
        %v964 = vpop.f32.mrb[0].mxu0
        %v965 = vadd.f32 %v266, %v964
        %v966 = vpop.f32.mrb[0].mxu0
        %967 = vmatprep.mubr.bf16.mxu0 0
        %968 = vmatmul.mubr.bf16.gmra.mrb[0].mxu0 %v442
        %v969 = vpop.f32.mrb[0].mxu0
        %v970 = vadd.f32 %v266, %v969
        %v971 = vpop.f32.mrb[0].mxu0
        %v972 = vpop.f32.mrb[0].mxu0
        %v973 = vadd.f32 %v266, %v972
        %v974 = vpop.f32.mrb[0].mxu0
        %975 = vmatprep.mubr.bf16.mxu0 0
        %976 = vmatmul.mubr.bf16.gmra.mrb[0].mxu0 %v445
        %v977 = vpop.f32.mrb[0].mxu0
        %v978 = vadd.f32 %v266, %v977
        %v979 = vpop.f32.mrb[0].mxu0
        %v980 = vpop.f32.mrb[0].mxu0
        %v981 = vadd.f32 %v266, %v980
        %v982 = vpop.f32.mrb[0].mxu0
        %983 = vmatprep.mubr.bf16.mxu0 0
        %984 = vmatmul.mubr.bf16.gmra.mrb[0].mxu0 %v448
        %v985 = vpop.f32.mrb[0].mxu0
        %v986 = vadd.f32 %v266, %v985
        %v987 = vpop.f32.mrb[0].mxu0
        %v988 = vpop.f32.mrb[0].mxu0
        %v989 = vadd.f32 %v266, %v988
        %v990 = vpop.f32.mrb[0].mxu0
        %991 = vmatprep.mubr.bf16.mxu0 0
        %992 = vmatmul.mubr.bf16.gmra.mrb[0].mxu0 %v451
        %v993 = vpop.f32.mrb[0].mxu0
        %v994 = vadd.f32 %v266, %v993
        %v995 = vpop.f32.mrb[0].mxu0
        %v996 = vpop.f32.mrb[0].mxu0
        %v997 = vadd.f32 %v266, %v996
        %v998 = vpop.f32.mrb[0].mxu0
        %999 = vdwg.mxu0
        %1000 = vst [vmem:[%s192] sm:$0xff] %v488
        %1001 = vst [vmem:[%s192 + $0x8] sm:$0xff] %v490
        %1002 = vst [vmem:[%s192 + $0x10] sm:$0xff] %v681
        %1003 = vst [vmem:[%s192 + $0x18] sm:$0xff] %v683
        %1004 = vst [vmem:[%s192 + $0x28] sm:$0xff] %v492
        %1005 = vst [vmem:[%s192 + $0x30] sm:$0xff] %v494
        %1006 = vst [vmem:[%s192 + $0x38] sm:$0xff] %v685
        %1007 = vst [vmem:[%s192 + $0x40] sm:$0xff] %v687
        %1008 = vst [vmem:[%s192 + $0x50] sm:$0xff] %v498
        %1009 = vst [vmem:[%s192 + $0x58] sm:$0xff] %v500
        %1010 = vst [vmem:[%s192 + $0x60] sm:$0xff] %v691
        %1011 = vst [vmem:[%s192 + $0x68] sm:$0xff] %v693
        %1012 = vst [vmem:[%s192 + $0x78] sm:$0xff] %v502
        %1013 = vst [vmem:[%s192 + $0x80] sm:$0xff] %v504
        %1014 = vst [vmem:[%s192 + $0x88] sm:$0xff] %v695
        %1015 = vst [vmem:[%s192 + $0x90] sm:$0xff] %v697
        %1016 = vst [vmem:[%s192 + $0xa0] sm:$0xff] %v508
        %1017 = vst [vmem:[%s192 + $0xa8] sm:$0xff] %v510
        %1018 = vst [vmem:[%s192 + $0xb0] sm:$0xff] %v701
        %1019 = vst [vmem:[%s192 + $0xb8] sm:$0xff] %v703
        %1020 = vst [vmem:[%s192 + $0xc8] sm:$0xff] %v512
        %1021 = vst [vmem:[%s192 + $0xd0] sm:$0xff] %v514
        %1022 = vst [vmem:[%s192 + $0xd8] sm:$0xff] %v705
        %1023 = vst [vmem:[%s192 + $0xe0] sm:$0xff] %v707
        %1024 = vst [vmem:[%s192 + $0xf0] sm:$0xff] %v518
        %1025 = vst [vmem:[%s192 + $0xf8] sm:$0xff] %v520
        %1026 = vst [vmem:[%s192 + $0x100] sm:$0xff] %v711
        %1027 = vst [vmem:[%s192 + $0x108] sm:$0xff] %v713
        %1028 = vst [vmem:[%s192 + $0x118] sm:$0xff] %v522
        %1029 = vst [vmem:[%s192 + $0x120] sm:$0xff] %v524
        %1030 = vst [vmem:[%s192 + $0x128] sm:$0xff] %v715
        %1031 = vst [vmem:[%s192 + $0x130] sm:$0xff] %v717
        %1032 = vst [vmem:[%s192 + $0x140] sm:$0xff] %v528
        %1033 = vst [vmem:[%s192 + $0x148] sm:$0xff] %v530
        %1034 = vst [vmem:[%s192 + $0x150] sm:$0xff] %v721
        %1035 = vst [vmem:[%s192 + $0x158] sm:$0xff] %v723
        %1036 = vst [vmem:[%s192 + $0x168] sm:$0xff] %v532
        %1037 = vst [vmem:[%s192 + $0x170] sm:$0xff] %v534
        %1038 = vst [vmem:[%s192 + $0x178] sm:$0xff] %v725
        %1039 = vst [vmem:[%s192 + $0x180] sm:$0xff] %v727
        %1040 = vst [vmem:[%s192 + $0x190] sm:$0xff] %v538
        %1041 = vst [vmem:[%s192 + $0x198] sm:$0xff] %v540
        %1042 = vst [vmem:[%s192 + $0x1a0] sm:$0xff] %v731
        %1043 = vst [vmem:[%s192 + $0x1a8] sm:$0xff] %v733
        %1044 = vst [vmem:[%s192 + $0x1b8] sm:$0xff] %v542
        %1045 = vst [vmem:[%s192 + $0x1c0] sm:$0xff] %v544
        %1046 = vst [vmem:[%s192 + $0x1c8] sm:$0xff] %v735
        %1047 = vst [vmem:[%s192 + $0x1d0] sm:$0xff] %v737
        %1048 = vst [vmem:[%s192 + $0x1e0] sm:$0xff] %v548
        %1049 = vst [vmem:[%s192 + $0x1e8] sm:$0xff] %v550
        %1050 = vst [vmem:[%s192 + $0x1f0] sm:$0xff] %v741
        %1051 = vst [vmem:[%s192 + $0x1f8] sm:$0xff] %v743
        %1052 = vst [vmem:[%s192 + $0x208] sm:$0xff] %v552
        %1053 = vst [vmem:[%s192 + $0x210] sm:$0xff] %v554
        %1054 = vst [vmem:[%s192 + $0x218] sm:$0xff] %v745
        %1055 = vst [vmem:[%s192 + $0x220] sm:$0xff] %v747
        %1056 = vst [vmem:[%s192 + $0x230] sm:$0xff] %v558
        %1057 = vst [vmem:[%s192 + $0x238] sm:$0xff] %v560
        %1058 = vst [vmem:[%s192 + $0x240] sm:$0xff] %v751
        %1059 = vst [vmem:[%s192 + $0x248] sm:$0xff] %v753
        %1060 = vst [vmem:[%s192 + $0x258] sm:$0xff] %v562
        %1061 = vst [vmem:[%s192 + $0x260] sm:$0xff] %v564
        %1062 = vst [vmem:[%s192 + $0x268] sm:$0xff] %v755
        %1063 = vst [vmem:[%s192 + $0x270] sm:$0xff] %v757
        %1064 = vst [vmem:[%s192 + $0x280] sm:$0xff] %v568
        %1065 = vst [vmem:[%s192 + $0x288] sm:$0xff] %v570
        %1066 = vst [vmem:[%s192 + $0x290] sm:$0xff] %v761
        %1067 = vst [vmem:[%s192 + $0x298] sm:$0xff] %v763
        %1068 = vst [vmem:[%s192 + $0x2a8] sm:$0xff] %v572
        %1069 = vst [vmem:[%s192 + $0x2b0] sm:$0xff] %v574
        %1070 = vst [vmem:[%s192 + $0x2b8] sm:$0xff] %v765
        %1071 = vst [vmem:[%s192 + $0x2c0] sm:$0xff] %v767
        %1072 = vst [vmem:[%s192 + $0x2d0] sm:$0xff] %v578
        %1073 = vst [vmem:[%s192 + $0x2d8] sm:$0xff] %v580
        %1074 = vst [vmem:[%s192 + $0x2e0] sm:$0xff] %v771
        %1075 = vst [vmem:[%s192 + $0x2e8] sm:$0xff] %v773
        %1076 = vst [vmem:[%s192 + $0x2f8] sm:$0xff] %v582
        %1077 = vst [vmem:[%s192 + $0x300] sm:$0xff] %v584
        %1078 = vst [vmem:[%s192 + $0x308] sm:$0xff] %v775
        %1079 = vst [vmem:[%s192 + $0x310] sm:$0xff] %v777
        %1080 = vst [vmem:[%s192 + $0x320] sm:$0xff] %v588
        %1081 = vst [vmem:[%s192 + $0x328] sm:$0xff] %v590
        %1082 = vst [vmem:[%s192 + $0x330] sm:$0xff] %v781
        %1083 = vst [vmem:[%s192 + $0x338] sm:$0xff] %v783
        %1084 = vst [vmem:[%s192 + $0x348] sm:$0xff] %v592
        %1085 = vst [vmem:[%s192 + $0x350] sm:$0xff] %v594
        %1086 = vst [vmem:[%s192 + $0x358] sm:$0xff] %v785
        %1087 = vst [vmem:[%s192 + $0x360] sm:$0xff] %v787
        %1088 = vst [vmem:[%s192 + $0x370] sm:$0xff] %v598
        %1089 = vst [vmem:[%s192 + $0x378] sm:$0xff] %v600
        %1090 = vst [vmem:[%s192 + $0x380] sm:$0xff] %v791
        %1091 = vst [vmem:[%s192 + $0x388] sm:$0xff] %v793
        %1092 = vst [vmem:[%s192 + $0x398] sm:$0xff] %v602
        %1093 = vst [vmem:[%s192 + $0x3a0] sm:$0xff] %v604
        %1094 = vst [vmem:[%s192 + $0x3a8] sm:$0xff] %v795
        %1095 = vst [vmem:[%s192 + $0x3b0] sm:$0xff] %v797
        %1096 = vst [vmem:[%s192 + $0x3c0] sm:$0xff] %v608
        %1097 = vst [vmem:[%s192 + $0x3c8] sm:$0xff] %v610
        %1098 = vst [vmem:[%s192 + $0x3d0] sm:$0xff] %v801
        %1099 = vst [vmem:[%s192 + $0x3d8] sm:$0xff] %v803
        %1100 = vst [vmem:[%s192 + $0x3e8] sm:$0xff] %v612
        %1101 = vst [vmem:[%s192 + $0x3f0] sm:$0xff] %v614
        %1102 = vst [vmem:[%s192 + $0x3f8] sm:$0xff] %v805
        %1103 = vst [vmem:[%s192 + $0x400] sm:$0xff] %v807
        %1104 = vst [vmem:[%s192 + $0x410] sm:$0xff] %v618
        %1105 = vst [vmem:[%s192 + $0x418] sm:$0xff] %v620
        %1106 = vst [vmem:[%s192 + $0x420] sm:$0xff] %v811
        %1107 = vst [vmem:[%s192 + $0x428] sm:$0xff] %v813
        %1108 = vst [vmem:[%s192 + $0x438] sm:$0xff] %v622
        %1109 = vst [vmem:[%s192 + $0x440] sm:$0xff] %v624
        %1110 = vst [vmem:[%s192 + $0x448] sm:$0xff] %v815
        %1111 = vst [vmem:[%s192 + $0x450] sm:$0xff] %v817
        %1112 = vst [vmem:[%s192 + $0x460] sm:$0xff] %v628
        %1113 = vst [vmem:[%s192 + $0x468] sm:$0xff] %v630
        %1114 = vst [vmem:[%s192 + $0x470] sm:$0xff] %v821
        %1115 = vst [vmem:[%s192 + $0x478] sm:$0xff] %v823
        %1116 = vst [vmem:[%s192 + $0x488] sm:$0xff] %v632
        %1117 = vst [vmem:[%s192 + $0x490] sm:$0xff] %v634
        %1118 = vst [vmem:[%s192 + $0x498] sm:$0xff] %v825
        %1119 = vst [vmem:[%s192 + $0x4a0] sm:$0xff] %v827
        %1120 = vst [vmem:[%s192 + $0x4b0] sm:$0xff] %v638
        %1121 = vst [vmem:[%s192 + $0x4b8] sm:$0xff] %v640
        %1122 = vst [vmem:[%s192 + $0x4c0] sm:$0xff] %v831
        %1123 = vst [vmem:[%s192 + $0x4c8] sm:$0xff] %v833
        %1124 = vst [vmem:[%s192 + $0x4d8] sm:$0xff] %v642
        %1125 = vst [vmem:[%s192 + $0x4e0] sm:$0xff] %v644
        %1126 = vst [vmem:[%s192 + $0x4e8] sm:$0xff] %v835
        %1127 = vst [vmem:[%s192 + $0x4f0] sm:$0xff] %v837
        %v1128 = vxor.u32 %v874, 2147483648
        %v1129 = vxor.u32 %v877, 2147483648
        %v1130 = vxor.u32 %v882, 2147483648
        %v1131 = vxor.u32 %v885, 2147483648
        %v1132 = vxor.u32 %v890, 2147483648
        %v1133 = vxor.u32 %v893, 2147483648
        %v1134 = vxor.u32 %v898, 2147483648
        %v1135 = vxor.u32 %v901, 2147483648
        %v1136 = vxor.u32 %v906, 2147483648
        %v1137 = vxor.u32 %v909, 2147483648
        %v1138 = vxor.u32 %v914, 2147483648
        %v1139 = vxor.u32 %v917, 2147483648
        %v1140 = vxor.u32 %v922, 2147483648
        %v1141 = vxor.u32 %v925, 2147483648
        %v1142 = vxor.u32 %v930, 2147483648
        %v1143 = vxor.u32 %v933, 2147483648
        %v1144 = vxor.u32 %v938, 2147483648
        %v1145 = vxor.u32 %v941, 2147483648
        %v1146 = vxor.u32 %v946, 2147483648
        %v1147 = vxor.u32 %v949, 2147483648
        %v1148 = vxor.u32 %v954, 2147483648
        %v1149 = vxor.u32 %v957, 2147483648
        %v1150 = vxor.u32 %v962, 2147483648
        %v1151 = vxor.u32 %v965, 2147483648
        %v1152 = vxor.u32 %v970, 2147483648
        %v1153 = vxor.u32 %v973, 2147483648
        %v1154 = vxor.u32 %v978, 2147483648
        %v1155 = vxor.u32 %v981, 2147483648
        %v1156 = vxor.u32 %v986, 2147483648
        %v1157 = vxor.u32 %v989, 2147483648
        %v1158 = vxor.u32 %v994, 2147483648
        %v1159 = vxor.u32 %v997, 2147483648
        %v1160 = vmul.f32 %v1128, 1.442695
        %v1161 = vpow.pop %v1160
        %v1162 = vmul.f32 %v1129, 1.442695
        %v1163 = vpow.pop %v1162
        %v1164 = vmul.f32 %v1130, 1.442695
        %v1165 = vpow.pop %v1164
        %v1166 = vmul.f32 %v1131, 1.442695
        %v1167 = vpow.pop %v1166
        %v1168 = vmul.f32 %v1132, 1.442695
        %v1169 = vpow.pop %v1168
        %v1170 = vmul.f32 %v1133, 1.442695
        %v1171 = vpow.pop %v1170
        %v1172 = vmul.f32 %v1134, 1.442695
        %v1173 = vpow.pop %v1172
        %v1174 = vmul.f32 %v1135, 1.442695
        %v1175 = vpow.pop %v1174
        %v1176 = vmul.f32 %v1136, 1.442695
        %v1177 = vpow.pop %v1176
        %v1178 = vmul.f32 %v1137, 1.442695
        %v1179 = vpow.pop %v1178
        %v1180 = vmul.f32 %v1138, 1.442695
        %v1181 = vpow.pop %v1180
        %v1182 = vmul.f32 %v1139, 1.442695
        %v1183 = vpow.pop %v1182
        %v1184 = vmul.f32 %v1140, 1.442695
        %v1185 = vpow.pop %v1184
        %v1186 = vmul.f32 %v1141, 1.442695
        %v1187 = vpow.pop %v1186
        %v1188 = vmul.f32 %v1142, 1.442695
        %v1189 = vpow.pop %v1188
        %v1190 = vmul.f32 %v1143, 1.442695
        %v1191 = vpow.pop %v1190
        %v1192 = vmul.f32 %v1144, 1.442695
        %v1193 = vpow.pop %v1192
        %v1194 = vmul.f32 %v1145, 1.442695
        %v1195 = vpow.pop %v1194
        %v1196 = vmul.f32 %v1146, 1.442695
        %v1197 = vpow.pop %v1196
        %v1198 = vmul.f32 %v1147, 1.442695
        %v1199 = vpow.pop %v1198
        %v1200 = vmul.f32 %v1148, 1.442695
        %v1201 = vpow.pop %v1200
        %v1202 = vmul.f32 %v1149, 1.442695
        %v1203 = vpow.pop %v1202
        %v1204 = vmul.f32 %v1150, 1.442695
        %v1205 = vpow.pop %v1204
        %v1206 = vmul.f32 %v1151, 1.442695
        %v1207 = vpow.pop %v1206
        %v1208 = vmul.f32 %v1152, 1.442695
        %v1209 = vpow.pop %v1208
        %v1210 = vmul.f32 %v1153, 1.442695
        %v1211 = vpow.pop %v1210
        %v1212 = vmul.f32 %v1154, 1.442695
        %v1213 = vpow.pop %v1212
        %v1214 = vmul.f32 %v1155, 1.442695
        %v1215 = vpow.pop %v1214
        %v1216 = vmul.f32 %v1156, 1.442695
        %v1217 = vpow.pop %v1216
        %v1218 = vmul.f32 %v1157, 1.442695
        %v1219 = vpow.pop %v1218
        %v1220 = vmul.f32 %v1158, 1.442695
        %v1221 = vpow.pop %v1220
        %v1222 = vmul.f32 %v1159, 1.442695
        %v1223 = vpow.pop %v1222
        %v1224 = vadd.f32 %v1161, 1.0
        %v1225 = vadd.f32 %v1163, 1.0
        %v1226 = vadd.f32 %v1165, 1.0
        %v1227 = vadd.f32 %v1167, 1.0
        %v1228 = vadd.f32 %v1169, 1.0
        %v1229 = vadd.f32 %v1171, 1.0
        %v1230 = vadd.f32 %v1173, 1.0
        %v1231 = vadd.f32 %v1175, 1.0
        %v1232 = vadd.f32 %v1177, 1.0
        %v1233 = vadd.f32 %v1179, 1.0
        %v1234 = vadd.f32 %v1181, 1.0
        %v1235 = vadd.f32 %v1183, 1.0
        %v1236 = vadd.f32 %v1185, 1.0
        %v1237 = vadd.f32 %v1187, 1.0
        %v1238 = vadd.f32 %v1189, 1.0
        %v1239 = vadd.f32 %v1191, 1.0
        %v1240 = vadd.f32 %v1193, 1.0
        %v1241 = vadd.f32 %v1195, 1.0
        %v1242 = vadd.f32 %v1197, 1.0
        %v1243 = vadd.f32 %v1199, 1.0
        %v1244 = vadd.f32 %v1201, 1.0
        %v1245 = vadd.f32 %v1203, 1.0
        %v1246 = vadd.f32 %v1205, 1.0
        %v1247 = vadd.f32 %v1207, 1.0
        %v1248 = vadd.f32 %v1209, 1.0
        %v1249 = vadd.f32 %v1211, 1.0
        %v1250 = vadd.f32 %v1213, 1.0
        %v1251 = vadd.f32 %v1215, 1.0
        %v1252 = vadd.f32 %v1217, 1.0
        %v1253 = vadd.f32 %v1219, 1.0
        %v1254 = vadd.f32 %v1221, 1.0
        %v1255 = vadd.f32 %v1223, 1.0
        %v1256 = vrcp.pop %v1224
        %v1257 = vmul.f32 1.0, %v1256
        %v1258 = vrcp.pop %v1225
        %v1259 = vmul.f32 1.0, %v1258
        %v1260 = vrcp.pop %v1226
        %v1261 = vmul.f32 1.0, %v1260
        %v1262 = vrcp.pop %v1227
        %v1263 = vmul.f32 1.0, %v1262
        %v1264 = vrcp.pop %v1228
        %v1265 = vmul.f32 1.0, %v1264
        %v1266 = vrcp.pop %v1229
        %v1267 = vmul.f32 1.0, %v1266
        %v1268 = vrcp.pop %v1230
        %v1269 = vmul.f32 1.0, %v1268
        %v1270 = vrcp.pop %v1231
        %v1271 = vmul.f32 1.0, %v1270
        %v1272 = vrcp.pop %v1232
        %v1273 = vmul.f32 1.0, %v1272
        %v1274 = vrcp.pop %v1233
        %v1275 = vmul.f32 1.0, %v1274
        %v1276 = vrcp.pop %v1234
        %v1277 = vmul.f32 1.0, %v1276
        %v1278 = vrcp.pop %v1235
        %v1279 = vmul.f32 1.0, %v1278
        %v1280 = vrcp.pop %v1236
        %v1281 = vmul.f32 1.0, %v1280
        %v1282 = vrcp.pop %v1237
        %v1283 = vmul.f32 1.0, %v1282
        %v1284 = vrcp.pop %v1238
        %v1285 = vmul.f32 1.0, %v1284
        %v1286 = vrcp.pop %v1239
        %v1287 = vmul.f32 1.0, %v1286
        %v1288 = vrcp.pop %v1240
        %v1289 = vmul.f32 1.0, %v1288
        %v1290 = vrcp.pop %v1241
        %v1291 = vmul.f32 1.0, %v1290
        %v1292 = vrcp.pop %v1242
        %v1293 = vmul.f32 1.0, %v1292
        %v1294 = vrcp.pop %v1243
        %v1295 = vmul.f32 1.0, %v1294
        %v1296 = vrcp.pop %v1244
        %v1297 = vmul.f32 1.0, %v1296
        %v1298 = vrcp.pop %v1245
        %v1299 = vmul.f32 1.0, %v1298
        %v1300 = vrcp.pop %v1246
        %v1301 = vmul.f32 1.0, %v1300
        %v1302 = vrcp.pop %v1247
        %v1303 = vmul.f32 1.0, %v1302
        %v1304 = vrcp.pop %v1248
        %v1305 = vmul.f32 1.0, %v1304
        %v1306 = vrcp.pop %v1249
        %v1307 = vmul.f32 1.0, %v1306
        %v1308 = vrcp.pop %v1250
        %v1309 = vmul.f32 1.0, %v1308
        %v1310 = vrcp.pop %v1251
        %v1311 = vmul.f32 1.0, %v1310
        %v1312 = vrcp.pop %v1252
        %v1313 = vmul.f32 1.0, %v1312
        %v1314 = vrcp.pop %v1253
        %v1315 = vmul.f32 1.0, %v1314
        %v1316 = vrcp.pop %v1254
        %v1317 = vmul.f32 1.0, %v1316
        %v1318 = vrcp.pop %v1255
        %v1319 = vmul.f32 1.0, %v1318
        %1320 = vst.msk [vmem:[%s192 + $0x20] sm:$0xff] %vm404, %v1257
        %1321 = vst.msk [vmem:[%s192 + $0x48] sm:$0xff] %vm404, %v1259
        %1322 = vst.msk [vmem:[%s192 + $0x70] sm:$0xff] %vm404, %v1261
        %1323 = vst.msk [vmem:[%s192 + $0x98] sm:$0xff] %vm404, %v1263
        %1324 = vst.msk [vmem:[%s192 + $0xc0] sm:$0xff] %vm404, %v1265
        %1325 = vst.msk [vmem:[%s192 + $0xe8] sm:$0xff] %vm404, %v1267
        %1326 = vst.msk [vmem:[%s192 + $0x110] sm:$0xff] %vm404, %v1269
        %1327 = vst.msk [vmem:[%s192 + $0x138] sm:$0xff] %vm404, %v1271
        %1328 = vst.msk [vmem:[%s192 + $0x160] sm:$0xff] %vm404, %v1273
        %1329 = vst.msk [vmem:[%s192 + $0x188] sm:$0xff] %vm404, %v1275
        %1330 = vst.msk [vmem:[%s192 + $0x1b0] sm:$0xff] %vm404, %v1277
        %1331 = vst.msk [vmem:[%s192 + $0x1d8] sm:$0xff] %vm404, %v1279
        %1332 = vst.msk [vmem:[%s192 + $0x200] sm:$0xff] %vm404, %v1281
        %1333 = vst.msk [vmem:[%s192 + $0x228] sm:$0xff] %vm404, %v1283
        %1334 = vst.msk [vmem:[%s192 + $0x250] sm:$0xff] %vm404, %v1285
        %1335 = vst.msk [vmem:[%s192 + $0x278] sm:$0xff] %vm404, %v1287
        %1336 = vst.msk [vmem:[%s192 + $0x2a0] sm:$0xff] %vm404, %v1289
        %1337 = vst.msk [vmem:[%s192 + $0x2c8] sm:$0xff] %vm404, %v1291
        %1338 = vst.msk [vmem:[%s192 + $0x2f0] sm:$0xff] %vm404, %v1293
        %1339 = vst.msk [vmem:[%s192 + $0x318] sm:$0xff] %vm404, %v1295
        %1340 = vst.msk [vmem:[%s192 + $0x340] sm:$0xff] %vm404, %v1297
        %1341 = vst.msk [vmem:[%s192 + $0x368] sm:$0xff] %vm404, %v1299
        %1342 = vst.msk [vmem:[%s192 + $0x390] sm:$0xff] %vm404, %v1301
        %1343 = vst.msk [vmem:[%s192 + $0x3b8] sm:$0xff] %vm404, %v1303
        %1344 = vst.msk [vmem:[%s192 + $0x3e0] sm:$0xff] %vm404, %v1305
        %1345 = vst.msk [vmem:[%s192 + $0x408] sm:$0xff] %vm404, %v1307
        %1346 = vst.msk [vmem:[%s192 + $0x430] sm:$0xff] %vm404, %v1309
        %1347 = vst.msk [vmem:[%s192 + $0x458] sm:$0xff] %vm404, %v1311
        %1348 = vst.msk [vmem:[%s192 + $0x480] sm:$0xff] %vm404, %v1313
        %1349 = vst.msk [vmem:[%s192 + $0x4a8] sm:$0xff] %vm404, %v1315
        %1350 = vst.msk [vmem:[%s192 + $0x4d0] sm:$0xff] %vm404, %v1317
        %1351 = vst.msk [vmem:[%s192 + $0x4f8] sm:$0xff] %vm404, %v1319
        %s1352 = sand.u32 %s95, 1
        %s1353 = scalar_lea.sflag [#allocation4], %s1352
        %s1354 = sand.u32 %s95, 1
        %s1355 = smul.addr %s1354, 1280
        %s1356 = scalar_lea.vmem [#allocation7], %s1355
        // Predicated region
        $region41: #{primary_caps_forward.1} parent=31 // pred_check
          %p1357 = pneg %p105
        $region42: #{primary_caps_forward.1} parent=31 // pred_check_branch
          %1359 = sbr.rel (%p1357) target = $region44
        $region43: #{primary_caps_forward.1} parent=31 // pred_region
          %s1360 = smul.u32 32, %s19
          %s1362 = ssub.s32 20480, 20480
          %1363 = vsyncadd %s1353, %s1362
          %s1364 = smul.addr %s1360, 5
          %s1365 = smul.addr %s1364, 128
          %s1366 = scalar_lea.hbm %s3, %s1365
          %s1367 = sshll.u32 %s1356, 4
          %s1368 = int_to_ptr.vmem [resolvable:$true] %s1367
          %1373 = dma.vmem_to_hbm [thread:$0]  %s1368, 20480, %s1366, %s1353, 640, 640, 40
        $region44: #{primary_caps_forward.1} parent=31 // pred_fallthru
          _
      $region32: #{primary_caps_forward.1} parent=5 // pred_fallthru
        _
      %p1374 = scmp.le.s32.totalorder 2, %s14
      // Predicated region
      $region45: #{primary_caps_forward.1} parent=5 // pred_check
        %p1375 = pneg %p1374
      $region46: #{primary_caps_forward.1} parent=5 // pred_check_branch
        %1377 = sbr.rel (%p1375) target = $region48
      $region47: #{primary_caps_forward.1} parent=5 // pred_region
        %s1378 = ssub.s32 %s14, 2
        // Predicated region
        $region49: #{primary_caps_forward.1} parent=47 // pred_check
          %p1379 = pneg %p111
        $region50: #{primary_caps_forward.1} parent=47 // pred_check_branch
          %1381 = sbr.rel (%p1379) target = $region52
        $region51: #{primary_caps_forward.1} parent=47 // pred_region
          %s1382 = sand.u32 %s96, 1
          %s1383 = scalar_lea.sflag [#allocation4], %s1382
          %s1384 = sand.u32 %s96, 1
          %s1385 = smul.addr %s1384, 1280
          %s1386 = scalar_lea.vmem [#allocation7], %s1385
          %1387 = dma.done %s1383, 20480
        $region52: #{primary_caps_forward.1} parent=47 // pred_fallthru
          _
      $region48: #{primary_caps_forward.1} parent=5 // pred_fallthru
        _
    $region6: #{primary_caps_forward.1} parent=1 // loop_footer
      %s18 = sadd.s32 1, %s14
    $region7: #{primary_caps_forward.1} parent=1 // loop_footer_branch
      %13 = sbr.rel target = $region3
    $region8: #{primary_caps_forward.1} parent=1 // loop_exit
      _
    %1388 = vsyncpa [#allocation3], 1
    %s1389 = scalar_lea.sflag [#allocation3], 1
    %1390 = vsyncpa %s1389, 1
    %1391 = vsyncpa [#allocation6], 1
    %1392 = vsyncpa [#allocation4], 1
    %s1393 = scalar_lea.sflag [#allocation4], 1
    %1394 = vsyncpa %s1393, 1

</llo_original>
